<compile_context>
chip_gen: v6e
topology: v6e:2x2x1
jax: 0.10.0
libtpu: 0.0.40
codegen_flags: <defaults>
</compile_context>

<pallas_src>
import functools

import numpy as np
import jax
import jax.numpy as jnp
from jax.experimental import pallas as pl
from jax.experimental.pallas import tpu as pltpu


def _round_up(x: int, m: int) -> int:
    return ((x + m - 1) // m) * m


def harmonic_kernel(ts_ref, freq_ref, phase_ref, o_ref, *, use_mxu: bool):
    # ts_ref:   (TB, 1)  f32
    # freq_ref: (1, TD)  f32
    # phase_ref:(1, TD)  f32
    # o_ref:    (TB, TD) out_dtype
    ts = ts_ref[...]
    freq = freq_ref[...]
    phase = phase_ref[...]
    if use_mxu:
        # Outer product on the MXU frees VALU slots for the cos polynomial
        # (useful when VALU-bound on v6e/v7x).
        prod = jax.lax.dot_general(ts, freq, (((1,), (0,)), ((), ())),
                                   preferred_element_type=jnp.float32)
    else:
        prod = ts * freq
    o_ref[...] = jnp.cos(prod + phase).astype(o_ref.dtype)


def pad_params(basis_freq, phase):
    """One-time (init-time) lane padding of parameters to (1, Dp), Dp % 128 == 0.

    Returns (freq_padded, phase_padded, logical_D)."""
    D = int(basis_freq.shape[0])
    Dp = max(128, _round_up(D, 128))
    freq2 = jnp.zeros((1, Dp), jnp.float32).at[0, :D].set(
        basis_freq.astype(jnp.float32))
    phase2 = jnp.zeros((1, Dp), jnp.float32).at[0, :D].set(
        phase.astype(jnp.float32))
    return freq2, phase2, D


def harmonic_encoder(ts, basis_freq, phase, *, d=None, out_dtype=jnp.float32,
                     block_b=1024, block_d=2048, use_mxu=False,
                     slice_output=True):
    """ts: (B,).  Params either raw (D,) vectors or pre-padded (1, Dp) rows
    from pad_params() (recommended; pass d=logical_D then).  Returns (B, D)
    (or the (B, Dp) slab when slice_output=False)."""
    B = int(ts.shape[0])

    if basis_freq.ndim == 1:
        # Convenience path with raw (D,) parameters.
        D = int(basis_freq.shape[0])
        Dp = max(128, _round_up(D, 128))
        if D == Dp:
            freq2 = basis_freq.reshape(1, Dp).astype(jnp.float32)
            phase2 = phase.reshape(1, Dp).astype(jnp.float32)
        else:
            freq2, phase2, _ = pad_params(basis_freq, phase)
    else:
        # Pre-padded (1, Dp) parameters -- no per-call padding work at all.
        freq2 = basis_freq.astype(jnp.float32)
        phase2 = phase.astype(jnp.float32)
        Dp = int(freq2.shape[1])
        D = int(d) if d is not None else Dp

    # ts as a (B, 1) column: pure reshape, no scatter, no batch padding.
    ts2 = ts.reshape(B, 1).astype(jnp.float32)

    # D tile: lane-dense, capped (tile D only when it is very wide).
    TD = max(128, min(Dp, (block_d // 128) * 128))

    # Batch tile from a VMEM budget: double-buffered output + one f32 temp
    # tile must fit well under v5e's 16 MiB default scoped VMEM.
    out_bytes = jnp.dtype(out_dtype).itemsize
    vmem_budget = 12 * 1024 * 1024
    per_row_bytes = TD * (2 * out_bytes + 4)
    TB = max(8, min((block_b // 8) * 8, (vmem_budget // per_row_bytes) // 8 * 8))
    TB = min(TB, _round_up(B, 8))

    grid = (pl.cdiv(B, TB), pl.cdiv(Dp, TD))

    out = pl.pallas_call(
        functools.partial(harmonic_kernel, use_mxu=use_mxu),
        out_shape=jax.ShapeDtypeStruct((B, Dp), out_dtype),
        grid=grid,
        in_specs=[
            pl.BlockSpec((TB, 1), lambda i, j: (i, 0)),    # per-tile timestamps
            pl.BlockSpec((1, TD), lambda i, j: (0, j)),    # resident freq row
            pl.BlockSpec((1, TD), lambda i, j: (0, j)),    # resident phase row
        ],
        out_specs=pl.BlockSpec((TB, TD), lambda i, j: (i, j)),
        compiler_params=pltpu.CompilerParams(
            # Both axes independent; shard across v7x's two TCs, neutral on
            # single-TC v5e/v6e.  If xprof shows one idle v7x core, switch the
            # batch axis to pltpu.CORE_PARALLEL.
            dimension_semantics=("parallel", "parallel"),
        ),
    )(ts2, freq2, phase2)

    # Only slice when D is not lane-aligned; callers that fuse downstream can
    # skip this full-output copy with slice_output=False.
    if slice_output and D != Dp:
        out = out[:, :D]
    return out


def init_params(dimension):
    # Matches torch init: basis_freq = 1 / 10 ** linspace(0, 9, dimension),
    # phase = zeros(dimension). Deterministic, no checkpoint load.
    basis_freq = (1.0 / 10.0 ** np.linspace(0, 9, dimension)).astype(np.float32)
    phase = np.zeros(dimension, dtype=np.float32)
    return jnp.asarray(basis_freq), jnp.asarray(phase)


def _reference(ts, basis_freq, phase):
    B = ts.shape[0]
    return jnp.cos(ts.reshape(B, 1, 1) * basis_freq.reshape(1, 1, -1)
                   + phase.reshape(1, 1, -1)).squeeze(1)


if __name__ == "__main__":
    # NOTE: at these demo sizes a standalone pallas_call is pure launch
    # overhead; the kernel is shaped for large B and/or fusion with consumers.
    B, DIM = 8, 128                     # lane-aligned dimension
    basis_freq, phase = init_params(DIM)
    # Recommended path: pad parameters once at init time.
    freq_p, phase_p, d_logical = pad_params(basis_freq, phase)

    key = jax.random.PRNGKey(0)
    ts = jax.random.uniform(key, (B,), jnp.float32, 0.0, 100.0)

    harmonic = jax.block_until_ready(
        harmonic_encoder(ts, freq_p, phase_p, d=d_logical))
    ref = np.asarray(_reference(ts, basis_freq, phase))
    assert harmonic.shape == (B, DIM)
    np.testing.assert_allclose(np.asarray(harmonic), ref, rtol=1e-5, atol=1e-5)

    # Ragged batch block + non-lane-aligned D (convenience (D,)-param path).
    B2, DIM2 = 10, 96
    bf2, ph2 = init_params(DIM2)
    ts2 = jax.random.uniform(jax.random.PRNGKey(0), (B2,), jnp.float32, 0.0, 50.0)
    h2 = jax.block_until_ready(harmonic_encoder(ts2, bf2, ph2))
    assert h2.shape == (B2, DIM2)
    np.testing.assert_allclose(np.asarray(h2),
                               np.asarray(_reference(ts2, bf2, ph2)),
                               rtol=1e-5, atol=1e-5)

    # bf16 output halves the dominant HBM write stream; only bf16-accurate.
    h_bf16 = jax.block_until_ready(
        harmonic_encoder(ts, freq_p, phase_p, d=d_logical,
                         out_dtype=jnp.bfloat16))
    np.testing.assert_allclose(np.asarray(h_bf16, dtype=np.float32), ref,
                               rtol=0.0, atol=2e-2)

    print("KERNEL_OK")
</pallas_src>

<mosaic_0001>
module attributes {stable_mosaic.version = 11 : i64} {
  func.func @harmonic_kernel(%arg0: i32, %arg1: i32, %arg2: memref<8x1xf32, #tpu.memory_space<vmem>>, %arg3: memref<1x128xf32, #tpu.memory_space<vmem>>, %arg4: memref<1x128xf32, #tpu.memory_space<vmem>>, %arg5: memref<8x128xf32, #tpu.memory_space<vmem>>) attributes {dimension_semantics = [#tpu.dimension_semantics<parallel>, #tpu.dimension_semantics<parallel>], iteration_bounds = array<i64: 1, 1>, scalar_prefetch = 0 : i64, scratch_operands = 0 : i64, tpu.core_type = #tpu.core_type<tc>, window_params = [{transform_indices = @transform_0, window_bounds = array<i64: 8, 1>}, {transform_indices = @transform_1, window_bounds = array<i64: 1, 128>}, {transform_indices = @transform_2, window_bounds = array<i64: 1, 128>}, {transform_indices = @transform_3, window_bounds = array<i64: 8, 128>}]} {
    %c0 = arith.constant 0 : index
    %c0_0 = arith.constant 0 : index
    %0 = vector.load %arg2[%c0, %c0_0] : memref<8x1xf32, #tpu.memory_space<vmem>>, vector<8x1xf32>
    %c0_1 = arith.constant 0 : index
    %c0_2 = arith.constant 0 : index
    %1 = vector.load %arg3[%c0_1, %c0_2] : memref<1x128xf32, #tpu.memory_space<vmem>>, vector<1x128xf32>
    %c0_3 = arith.constant 0 : index
    %c0_4 = arith.constant 0 : index
    %2 = vector.load %arg4[%c0_3, %c0_4] : memref<1x128xf32, #tpu.memory_space<vmem>>, vector<1x128xf32>
    %3 = vector.broadcast %0 : vector<8x1xf32> to vector<8x128xf32>
    %4 = vector.broadcast %1 : vector<1x128xf32> to vector<8x128xf32>
    %5 = arith.mulf %3, %4 : vector<8x128xf32>
    %6 = vector.broadcast %2 : vector<1x128xf32> to vector<8x128xf32>
    %7 = arith.addf %5, %6 : vector<8x128xf32>
    %8 = math.cos %7 : vector<8x128xf32>
    %c0_5 = arith.constant 0 : index
    %c0_6 = arith.constant 0 : index
    %9 = vector.load %arg5[%c0_5, %c0_6] : memref<8x128xf32, #tpu.memory_space<vmem>>, vector<8x128xf32>
    tpu.vector_store %arg5[%c0_5, %c0_6], %8 {strides = array<i32>} : memref<8x128xf32, #tpu.memory_space<vmem>>, vector<8x128xf32>,
    return
  }
  func.func @transform_0(%arg0: i32, %arg1: i32) -> (i32, i32) {
    %c0_i32 = arith.constant 0 : i32
    %c0_i32_0 = arith.constant 0 : i32
    return %arg0, %c0_i32 : i32, i32
  }
  func.func @transform_1(%arg0: i32, %arg1: i32) -> (i32, i32) {
    %c0_i32 = arith.constant 0 : i32
    %c0_i32_0 = arith.constant 0 : i32
    return %c0_i32, %arg1 : i32, i32
  }
  func.func @transform_2(%arg0: i32, %arg1: i32) -> (i32, i32) {
    %c0_i32 = arith.constant 0 : i32
    %c0_i32_0 = arith.constant 0 : i32
    return %c0_i32, %arg1 : i32, i32
  }
  func.func @transform_3(%arg0: i32, %arg1: i32) -> (i32, i32) {
    %c0_i32 = arith.constant 0 : i32
    return %arg0, %arg1 : i32, i32
  }
}

</mosaic_0001>

<llo_original>
// kernel: tpu_custom_call.1
$region0: #{tpu_custom_call.1}
  #allocation0 [shape = 'u32[]', space=smem, size = 0x4, offset = 0x4, fixed_abs, tag = 'smem constant byte address 0x4 - core index']
  #allocation1 [shape = 'u32[144,128]{1,0:T(1,128)}', space=vmem, size = 0x12000, scoped, tag = 'internal scratch']
  %s0 = inlined_call_operand.vmem [shape: f32[8,1], index: 0, kind: input, shape index: {}]
  %s1 = inlined_call_operand.vmem [shape: f32[1,128], index: 1, kind: input, shape index: {}]
  %s2 = inlined_call_operand.vmem [shape: f32[1,128], index: 2, kind: input, shape index: {}]
  %s3 = inlined_call_operand.hbm [shape: f32[8,128], index: 3, kind: output, shape index: {}]
  %s4 = sld [smem:[#allocation0]]
  $region22: #{tpu_custom_call.1} parent=0
    _
  %s6 = ssub.s32 1, %s4
  %s7 = scalar_select 0, %s6, %s4
  $region1: #{tpu_custom_call.1} parent=0
    #allocation2 [shape = 'u8[4096]{0}', space=vmem, size = 0x1000, scoped, tag = 'output window, operand 0, single buffered']
    #allocation3 [shape = 's32[1]{0}', space=sflag, size = 0x4, scoped, tag = 'scoped memory for tpu_custom_call.1']
    %8 = vsyncpa [#allocation3], 0
    // Predicated region
    $region2: #{tpu_custom_call.1} parent=1 // pred_check
      _
    $region3: #{tpu_custom_call.1} parent=1 // pred_check_branch
      %10 = sbr.rel (0) target = $region5
    $region4: #{tpu_custom_call.1} parent=1 // pred_region
      _
    $region5: #{tpu_custom_call.1} parent=1 // pred_fallthru
      _
    // Predicated region
    $region6: #{tpu_custom_call.1} parent=1 // pred_check
      _
    $region7: #{tpu_custom_call.1} parent=1 // pred_check_branch
      %12 = sbr.rel (0) target = $region9
    $region8: #{tpu_custom_call.1} parent=1 // pred_region
      _
    $region9: #{tpu_custom_call.1} parent=1 // pred_fallthru
      _
    // Predicated region
    $region10: #{tpu_custom_call.1} parent=1 // pred_check
      _
    $region11: #{tpu_custom_call.1} parent=1 // pred_check_branch
      %14 = sbr.rel (0) target = $region13
    $region12: #{tpu_custom_call.1} parent=1 // pred_region
      _
    $region13: #{tpu_custom_call.1} parent=1 // pred_fallthru
      _
    %v15 = vld [vmem:[%s0] sm:$0xff]
    %v16 = vld [vmem:[%s1] sm:$0x1]
    %v17 = vld [vmem:[%s2] sm:$0x1]
    %19 = vset.pattern.permute.xlu0 0
    %20 = vperm.xlu0 %19, %v15
    %v21 = vpop.permute.xlu0 %20
    %v24 = vlaneseq
    %v25 = vshrl.u32 %v24, 7
    %v26 = vsub.s32 0, %v25
    %v27 = vrot.slane %v16, %v26
    %v29 = vmul.f32 %v21, %v27
    %v31 = vlaneseq
    %v32 = vshrl.u32 %v31, 7
    %v33 = vsub.s32 0, %v32
    %v34 = vrot.slane %v17, %v33
    %v36 = vadd.f32 %v29, %v34
    %v37 = vand.u32 2147483647, %v36
    %vm38 = vcmp.le.f32.partialorder %v37, 0.7853982
    %vm39 = vcmp.lt.s32.totalorder %v36, 0
    %v40 = vand.u32 %v36, 2139095040
    %v41 = vshrl.u32 %v40, 23
    %v42 = vsub.s32 %v41, 127
    %v43 = vand.u32 2147483647, %v36
    %v44 = vand.u32 %v43, 8388607
    %v45 = vor.u32 %v44, 8388608
    %v46 = vsub.s32 0, %v45
    %v47 = vadd.s32 %v42, 1
    %vm48 = vcmp.gt.s32.totalorder %v47, 0
    %v49 = vsel %vm48, %v47, 0
    %v50 = vshrl.u32 %v49, 5
    %v51 = vand.u32 %v49, 31
    %v52 = vsub.s32 32, %v51
    %v53 = vshrl.u32 683565275, %v52
    %v54 = vshll.u32 683565275, %v51
    %v55 = vshrl.u32 2475754826, %v52
    %v56 = vor.u32 %v54, %v55
    %v57 = vshll.u32 2475754826, %v51
    %v58 = vshrl.u32 2131351028, %v52
    %v59 = vor.u32 %v57, %v58
    %v60 = vshll.u32 2131351028, %v51
    %v61 = vshrl.u32 2102212464, %v52
    %v62 = vor.u32 %v60, %v61
    %v63 = vshll.u32 2102212464, %v51
    %v64 = vshrl.u32 920167782, %v52
    %v65 = vor.u32 %v63, %v64
    %v66 = vshll.u32 920167782, %v51
    %v67 = vshrl.u32 1326507024, %v52
    %v68 = vor.u32 %v66, %v67
    %vm69 = vcmp.lt.s32.totalorder %v50, 1
    %vm70 = vcmp.lt.s32.totalorder %v50, 2
    %vm71 = vcmp.lt.s32.totalorder %v50, 3
    %vm72 = vcmp.lt.s32.totalorder %v50, 4
    %v73 = vsel %vm69, %v53, %v56
    %v74 = vsel %vm72, %v62, 2102212464
    %v75 = vsel %vm71, %v59, %v74
    %v76 = vsel %vm70, %v73, %v75
    %v77 = vsel %vm69, %v56, %v59
    %v78 = vsel %vm72, %v65, 920167782
    %v79 = vsel %vm71, %v62, %v78
    %v80 = vsel %vm70, %v77, %v79
    %v81 = vsel %vm69, %v59, %v62
    %v82 = vsel %vm72, %v68, 1326507024
    %v83 = vsel %vm71, %v65, %v82
    %v84 = vsel %vm70, %v81, %v83
    %v85 = vshll.u32 %v45, 8
    %v86 = vmul.u32.u64.compose %v85, %v84
    %v87 = vextract.low.u32 %v86
    %v88 = vextract.high.u32 %v86
    %v89 = vmul.u32.u64.compose %v85, %v80
    %v90 = vextract.low.u32 %v89
    %v91 = vextract.high.u32 %v89
    %v92 = vmul.u32 %v85, %v76
    %v93 = vadd.s32 %v88, %v90
    %vm94 = vc.u32 %v88, %v90
    %v95 = vadd.s32 %v91, 1
    %v96 = vsel %vm94, %v95, %v91
    %v97 = vadd.s32 %v92, %v96
    %v98 = vadd.s32 %v97, 536870912
    %v99 = vshrl.u32 %v98, 30
    %v100 = vshll.u32 %v99, 30
    %v101 = vsub.s32 %v97, %v100
    %vm102 = vcmp.lt.s32.totalorder %v101, 0
    %v103 = vsub.s32 0, %v101
    %v104 = vsel %vm102, %v103, %v101
    %v105 = vclz %v104
    %v106 = vsub.s32 %v105, 2
    %vm107 = vcmp.gt.s32.totalorder 0, %v106
    %v108 = vsel %vm107, 0, %v106
    %v109 = vsub.s32 32, %v108
    %v110 = vshll.u32 %v101, %v108
    %v111 = vshrl.u32 %v93, %v109
    %v112 = vor.u32 %v110, %v111
    %v113 = vsub.s32 4294967266, %v108
    %v114 = vadd.s32 %v113, 127
    %v115 = vshll.u32 %v114, 23
    %v116 = vor.u32 4788187, %v115
    %v117 = vand.u32 2147483647, %v116
    %v119 = vcvt.s32.f32 %v112
    %v120 = vmul.f32 %v119, %v117
    %v121 = vxor.u32 %v120, 2147483648
    %v122 = vsel %vm39, %v121, %v120
    %v123 = vsub.s32 4, %v99
    %v124 = vsel %vm39, %v123, %v99
    %v125 = vsel %vm38, %v36, %v122
    %v126 = vsel %vm38, 0, %v124
    %v127 = vcosq.f32.pop %v125
    %v128 = vsinq.f32.pop %v125
    %vm129 = vweird.f32 %v36
    %v130 = vand.u32 %v126, 3
    %vm131 = vcmp.lt.s32.totalorder %v130, 2
    %vm132 = vcmp.eq.s32.totalorder %v130, 0
    %v133 = vxor.u32 %v128, 2147483648
    %v134 = vsel %vm132, %v127, %v133
    %vm135 = vcmp.eq.s32.totalorder %v130, 2
    %v136 = vxor.u32 %v127, 2147483648
    %v137 = vsel %vm135, %v136, %v128
    %v138 = vsel %vm131, %v134, %v137
    %v139 = vsel %vm129, nan, %v138
    %140 = vst [vmem:[#allocation2] sm:$0xff] %v139
    // Predicated region
    $region14: #{tpu_custom_call.1} parent=1 // pred_check
      _
    $region15: #{tpu_custom_call.1} parent=1 // pred_check_branch
      %142 = sbr.rel (0) target = $region17
    $region16: #{tpu_custom_call.1} parent=1 // pred_region
      %s144 = ssub.s32 128, 128
      %145 = vsyncadd [#allocation3], %s144
      %s147 = sshll.u32 [#allocation2], 4
      %s148 = int_to_ptr.vmem [resolvable:$true] %s147
      %150 = dma.vmem_to_hbm [thread:$0]  %s148, 128, %s3, [#allocation3]
    $region17: #{tpu_custom_call.1} parent=1 // pred_fallthru
      _
    // Predicated region
    $region18: #{tpu_custom_call.1} parent=1 // pred_check
      _
    $region19: #{tpu_custom_call.1} parent=1 // pred_check_branch
      %152 = sbr.rel (0) target = $region21
    $region20: #{tpu_custom_call.1} parent=1 // pred_region
      %153 = dma.done [#allocation3], 128
    $region21: #{tpu_custom_call.1} parent=1 // pred_fallthru
      _
    %154 = vsyncpa [#allocation3], 1

</llo_original>
